<compile_context>
chip_gen: v7x
topology: tpu7x:2x2x1
jax: 0.10.0
libtpu: 0.0.40
codegen_flags: <defaults>
</compile_context>

<pallas_src>
import functools

import jax
import jax.numpy as jnp
from jax import lax
from jax.experimental import pallas as pl
from jax.experimental.pallas import tpu as pltpu


# ----------------------------------------------------------------------------- kernel


def _seq_ce_kernel(logits_ref, tgt_ref, mask_ref, out_ref, *, label_smoothing):
    # logits_ref: (R, V) native dtype; tgt_ref: (1, R) i32 (lane-dense)
    # mask_ref:   (1, R) f32 (lane-dense); out_ref: (1, R) f32 (lane-dense)
    R, V = logits_ref.shape

    x = logits_ref[...].astype(jnp.float32)                      # (R, V) f32
    m = jnp.max(x, axis=-1, keepdims=True)                       # (R, 1)
    sumexp = jnp.sum(jnp.exp(x - m), axis=-1, keepdims=True)     # (R, 1)
    lse = m + jnp.log(sumexp)                                    # (R, 1) logsumexp per row

    # Identity mask used for the lane<->sublane relayouts of per-row scalars.
    ri = lax.broadcasted_iota(jnp.int32, (R, R), 0)
    ci = lax.broadcasted_iota(jnp.int32, (R, R), 1)
    eye = (ri == ci).astype(jnp.float32)                         # (R, R)

    # lane-dense (1, R) targets -> (R, 1) column (exact for any vocab < 2^24).
    tgt_row_f = tgt_ref[...].astype(jnp.float32)                 # (1, R)
    tgt_col = jnp.sum(eye * tgt_row_f, axis=-1,
                      keepdims=True).astype(jnp.int32)           # (R, 1)

    # x[row, target[row]] via one-hot masked lane reduction — no logp tile.
    colv = lax.broadcasted_iota(jnp.int32, (R, V), 1)            # (R, V)
    xt = jnp.sum(jnp.where(colv == tgt_col, x, 0.0),
                 axis=-1, keepdims=True)                         # (R, 1)

    if label_smoothing > 0.0:
        ls = label_smoothing
        sum_x = jnp.sum(x, axis=-1, keepdims=True)               # (R, 1)
        # -[ (1-ls)*(x_t - lse) + (ls/V)*(sum_x - V*lse) ]
        nll = (1.0 - ls) * (lse - xt) + ls * lse - (ls / V) * sum_x
    else:
        nll = lse - xt                                           # (R, 1)

    # per-row column -> lane-dense row, apply mask, unmasked lane-dense store.
    nll_row = jnp.sum(eye * nll, axis=0, keepdims=True)          # (1, R)
    out_ref[...] = nll_row * mask_ref[...]


# ----------------------------------------------------------------------------- wrapper


def _round_up(x, m):
    return ((x + m - 1) // m) * m


def _vmem_capacity_bytes():
    """Physical VMEM per TensorCore; conservative 64 MiB fallback (v7x-sized)."""
    phys = 64 * 1024 * 1024
    try:
        info = pltpu.get_tpu_info()
        phys = int(getattr(info, "vmem_capacity_bytes", phys)) or phys
    except Exception:
        pass
    return phys


def _derive_row_tile(V, in_itemsize, vmem_budget_bytes, max_tile=512):
    # Per row resident in VMEM: double-buffered input tile (2 * V * itemsize) plus
    # ~5 f32 (R, V)-wide in-kernel temporaries (upcast, exp, one-hot select, ...).
    bytes_per_row = V * (2 * in_itemsize + 20)
    r = vmem_budget_bytes // max(bytes_per_row, 1)
    r = max(8, min(int(r), max_tile))
    return (r // 8) * 8


def sequence_cross_entropy_loss(logits, targets, mask, label_smoothing=-1,
                                reduce=None, row_tile=None):
    """Matches SequenceCrossEntropyLoss.forward semantics.

    reduce: None -> [B, S]; "sentence" -> [B]; "batch" -> scalar.
    """
    B, S, V = logits.shape
    N = B * S

    phys_vmem = _vmem_capacity_bytes()
    if row_tile is None:
        itemsize = jnp.dtype(logits.dtype).itemsize
        row_tile = _derive_row_tile(V, itemsize, int(phys_vmem * 0.5))
        row_tile = min(row_tile, _round_up(N, 8))        # avoid gross over-padding
    R = int(row_tile)
    assert R >= 8 and R % 8 == 0, "row_tile must be a multiple of 8"

    G = pl.cdiv(N, R)
    Npad = G * R
    pad = Npad - N

    # logits keep their native dtype (bf16 stays bf16): upcast happens in-kernel.
    logits_flat = logits.reshape(N, V)
    tgt_flat = targets.reshape(N).astype(jnp.int32)
    mask_f32 = mask.astype(jnp.float32)
    mask_flat = mask_f32.reshape(N)
    if pad:
        # Padded rows get mask 0 and are sliced off below.
        logits_flat = jnp.pad(logits_flat, ((0, pad), (0, 0)))
        tgt_flat = jnp.pad(tgt_flat, (0, pad))
        mask_flat = jnp.pad(mask_flat, (0, pad))

    # Lane-dense side inputs / output: (G, 1, R) with (1, R) blocks.
    tgt_rows = tgt_flat.reshape(G, 1, R)
    mask_rows = mask_flat.reshape(G, 1, R)

    kernel = functools.partial(_seq_ce_kernel,
                               label_smoothing=float(label_smoothing))

    masked_nll = pl.pallas_call(
        kernel,
        out_shape=jax.ShapeDtypeStruct((G, 1, R), jnp.float32),
        grid_spec=pltpu.PrefetchScalarGridSpec(
            num_scalar_prefetch=0,
            grid=(G,),
            in_specs=[
                pl.BlockSpec((R, V), lambda i: (i, 0)),           # logits tile
                pl.BlockSpec((None, 1, R), lambda i: (i, 0, 0)),  # targets (lane-dense)
                pl.BlockSpec((None, 1, R), lambda i: (i, 0, 0)),  # mask (lane-dense)
            ],
            out_specs=pl.BlockSpec((None, 1, R), lambda i: (i, 0, 0)),
        ),
        compiler_params=pltpu.CompilerParams(
            dimension_semantics=("parallel",),
            vmem_limit_bytes=int(phys_vmem * 0.8),
        ),
    )(logits_flat, tgt_rows, mask_rows)

    # TODO(synk): for very large V on small-VMEM parts (v7x), add a V-blocked
    # online-logsumexp variant so row_tile stays decoupled from V.

    loss = masked_nll.reshape(Npad)[:N].reshape(B, S)             # nll * mask per token
    if reduce:
        loss = loss.sum(axis=1) / (mask_f32.sum(axis=1) + 1e-13)
        if reduce == "batch":
            loss = loss.mean()
    return loss


# ----------------------------------------------------------------------------- reference


def _reference(logits, targets, mask, label_smoothing=-1, reduce=None):
    """Pure-JAX reference mirroring the PyTorch module."""
    B, S, V = logits.shape
    logp = jax.nn.log_softmax(logits.astype(jnp.float32).reshape(-1, V), axis=-1)
    tgt = targets.reshape(-1).astype(jnp.int32)
    if label_smoothing > 0.0:
        sval = label_smoothing / float(V)
        onehot = jax.nn.one_hot(tgt, V, dtype=jnp.float32) * (1.0 - label_smoothing)
        smoothed = onehot + sval
        nll = -(logp * smoothed).sum(-1)
    else:
        nll = -jnp.take_along_axis(logp, tgt[:, None], axis=1)[:, 0]
    loss = nll.reshape(B, S) * mask.astype(jnp.float32)
    if reduce:
        loss = loss.sum(1) / (mask.astype(jnp.float32).sum(1) + 1e-13)
        if reduce == "batch":
            loss = loss.mean()
    return loss


# ----------------------------------------------------------------------------- test


if __name__ == "__main__":
    key = jax.random.PRNGKey(0)

    # (2, 8): N divisible by the (clamped) tile; (3, 5): exercises the padding path.
    for (B, S, V) in [(2, 8, 32), (3, 5, 32)]:
        k1, k2, k3 = jax.random.split(jax.random.fold_in(key, B * 100 + S), 3)
        logits = jax.random.normal(k1, (B, S, V), dtype=jnp.float32)
        targets = jax.random.randint(k2, (B, S), 0, V, dtype=jnp.int32)
        mask = (jax.random.uniform(k3, (B, S)) > 0.2).astype(jnp.float32)

        out = jax.block_until_ready(
            sequence_cross_entropy_loss(logits, targets, mask, -1, None))
        ref = _reference(logits, targets, mask, -1, None)
        assert out.shape == (B, S)
        assert jnp.allclose(out, ref, atol=1e-5, rtol=1e-5), (B, S, "plain")

        out_s = jax.block_until_ready(
            sequence_cross_entropy_loss(logits, targets, mask, 0.1, "sentence"))
        ref_s = _reference(logits, targets, mask, 0.1, "sentence")
        assert jnp.allclose(out_s, ref_s, atol=1e-5, rtol=1e-5), (B, S, "sentence")

        out_b = jax.block_until_ready(
            sequence_cross_entropy_loss(logits, targets, mask, 0.1, "batch"))
        ref_b = _reference(logits, targets, mask, 0.1, "batch")
        assert jnp.allclose(out_b, ref_b, atol=1e-5, rtol=1e-5), (B, S, "batch")

    # bf16 logits: DMA'd as bf16, upcast to f32 inside the kernel.
    B, S, V = 2, 8, 32
    k1, k2, k3 = jax.random.split(key, 3)
    logits_bf16 = jax.random.normal(k1, (B, S, V), dtype=jnp.float32).astype(jnp.bfloat16)
    targets = jax.random.randint(k2, (B, S), 0, V, dtype=jnp.int32)
    mask = (jax.random.uniform(k3, (B, S)) > 0.2).astype(jnp.float32)
    out16 = jax.block_until_ready(
        sequence_cross_entropy_loss(logits_bf16, targets, mask, -1, None))
    ref16 = _reference(logits_bf16.astype(jnp.float32), targets, mask, -1, None)
    assert jnp.allclose(out16, ref16, atol=1e-3, rtol=1e-3), "bf16"

    print("KERNEL_OK")
</pallas_src>

<mosaic_0001>
module attributes {stable_mosaic.version = 11 : i64} {
  func.func @_seq_ce_kernel(%arg0: i32, %arg1: memref<16x32xf32, #tpu.memory_space<vmem>>, %arg2: memref<1x1x16xi32, #tpu.memory_space<vmem>>, %arg3: memref<1x1x16xf32, #tpu.memory_space<vmem>>, %arg4: memref<1x1x16xf32, #tpu.memory_space<vmem>>) attributes {dimension_semantics = [#tpu.dimension_semantics<parallel>], iteration_bounds = array<i64: 1>, scalar_prefetch = 0 : i64, scratch_operands = 0 : i64, tpu.core_type = #tpu.core_type<tc>, window_params = [{transform_indices = @transform_0, window_bounds = array<i64: 16, 32>}, {transform_indices = @transform_1, window_bounds = array<i64: 1, 1, 16>}, {transform_indices = @transform_2, window_bounds = array<i64: 1, 1, 16>}, {transform_indices = @transform_3, window_bounds = array<i64: 1, 1, 16>}]} {
    %c0 = arith.constant 0 : index
    %c0_0 = arith.constant 0 : index
    %0 = vector.load %arg1[%c0, %c0_0] : memref<16x32xf32, #tpu.memory_space<vmem>>, vector<16x32xf32>
    %cst = arith.constant dense<0xFF800000> : vector<16xf32>
    %1 = vector.multi_reduction <maximumf>, %0, %cst [1] : vector<16x32xf32> to vector<16xf32>
    %2 = vector.shape_cast %1 : vector<16xf32> to vector<16x1xf32>
    %3 = vector.broadcast %2 : vector<16x1xf32> to vector<16x32xf32>
    %4 = arith.subf %0, %3 : vector<16x32xf32>
    %5 = math.exp %4 : vector<16x32xf32>
    %cst_1 = arith.constant dense<0.000000e+00> : vector<16xf32>
    %6 = vector.multi_reduction <add>, %5, %cst_1 [1] : vector<16x32xf32> to vector<16xf32>
    %7 = vector.shape_cast %6 : vector<16xf32> to vector<16x1xf32>
    %8 = math.log %7 : vector<16x1xf32>
    %9 = arith.addf %2, %8 : vector<16x1xf32>
    %10 = tpu.iota {dimensions = array<i32: 0>} : vector<16x16xi32>
    %11 = tpu.iota {dimensions = array<i32: 1>} : vector<16x16xi32>
    %12 = arith.cmpi eq, %10, %11 : vector<16x16xi32>
    %13 = arith.extui %12 : vector<16x16xi1> to vector<16x16xi32>
    %14 = arith.sitofp %13 : vector<16x16xi32> to vector<16x16xf32>
    %c0_2 = arith.constant 0 : index
    %c0_3 = arith.constant 0 : index
    %c0_4 = arith.constant 0 : index
    %15 = vector.load %arg2[%c0_2, %c0_3, %c0_4] : memref<1x1x16xi32, #tpu.memory_space<vmem>>, vector<1x1x16xi32>
    %16 = vector.shape_cast %15 : vector<1x1x16xi32> to vector<1x16xi32>
    %17 = arith.sitofp %16 : vector<1x16xi32> to vector<1x16xf32>
    %18 = vector.broadcast %17 : vector<1x16xf32> to vector<16x16xf32>
    %19 = arith.mulf %14, %18 : vector<16x16xf32>
    %cst_5 = arith.constant dense<0.000000e+00> : vector<16xf32>
    %20 = vector.multi_reduction <add>, %19, %cst_5 [1] : vector<16x16xf32> to vector<16xf32>
    %21 = vector.shape_cast %20 : vector<16xf32> to vector<16x1xf32>
    %22 = arith.fptosi %21 : vector<16x1xf32> to vector<16x1xi32>
    %23 = tpu.iota {dimensions = array<i32: 1>} : vector<16x32xi32>
    %24 = vector.broadcast %22 : vector<16x1xi32> to vector<16x32xi32>
    %25 = arith.cmpi eq, %23, %24 : vector<16x32xi32>
    %cst_6 = arith.constant 0.000000e+00 : f32
    %26 = vector.broadcast %cst_6 : f32 to vector<16x32xf32>
    %27 = arith.select %25, %0, %26 : vector<16x32xi1>, vector<16x32xf32>
    %cst_7 = arith.constant dense<0.000000e+00> : vector<16xf32>
    %28 = vector.multi_reduction <add>, %27, %cst_7 [1] : vector<16x32xf32> to vector<16xf32>
    %29 = vector.shape_cast %28 : vector<16xf32> to vector<16x1xf32>
    %30 = arith.subf %9, %29 : vector<16x1xf32>
    %31 = vector.broadcast %30 : vector<16x1xf32> to vector<16x16xf32>
    %32 = arith.mulf %14, %31 : vector<16x16xf32>
    %cst_8 = arith.constant dense<0.000000e+00> : vector<16xf32>
    %33 = vector.multi_reduction <add>, %32, %cst_8 [0] : vector<16x16xf32> to vector<16xf32>
    %34 = vector.shape_cast %33 : vector<16xf32> to vector<1x16xf32>
    %c0_9 = arith.constant 0 : index
    %c0_10 = arith.constant 0 : index
    %c0_11 = arith.constant 0 : index
    %35 = vector.load %arg3[%c0_9, %c0_10, %c0_11] : memref<1x1x16xf32, #tpu.memory_space<vmem>>, vector<1x1x16xf32>
    %36 = vector.shape_cast %35 : vector<1x1x16xf32> to vector<1x16xf32>
    %37 = arith.mulf %34, %36 : vector<1x16xf32>
    %c0_12 = arith.constant 0 : index
    %c0_13 = arith.constant 0 : index
    %c0_14 = arith.constant 0 : index
    %38 = vector.load %arg4[%c0_12, %c0_13, %c0_14] : memref<1x1x16xf32, #tpu.memory_space<vmem>>, vector<1x1x16xf32>
    %39 = vector.shape_cast %38 : vector<1x1x16xf32> to vector<1x16xf32>
    %40 = vector.shape_cast %37 : vector<1x16xf32> to vector<1x1x16xf32>
    tpu.vector_store %arg4[%c0_12, %c0_13, %c0_14], %40 {strides = array<i32>} : memref<1x1x16xf32, #tpu.memory_space<vmem>>, vector<1x1x16xf32>,
    return
  }
  func.func @transform_0(%arg0: i32) -> (i32, i32) {
    %c0_i32 = arith.constant 0 : i32
    %c0_i32_0 = arith.constant 0 : i32
    return %arg0, %c0_i32 : i32, i32
  }
  func.func @transform_1(%arg0: i32) -> (i32, i32, i32) {
    %c0_i32 = arith.constant 0 : i32
    %c0_i32_0 = arith.constant 0 : i32
    %c0_i32_1 = arith.constant 0 : i32
    return %arg0, %c0_i32, %c0_i32_0 : i32, i32, i32
  }
  func.func @transform_2(%arg0: i32) -> (i32, i32, i32) {
    %c0_i32 = arith.constant 0 : i32
    %c0_i32_0 = arith.constant 0 : i32
    %c0_i32_1 = arith.constant 0 : i32
    return %arg0, %c0_i32, %c0_i32_0 : i32, i32, i32
  }
  func.func @transform_3(%arg0: i32) -> (i32, i32, i32) {
    %c0_i32 = arith.constant 0 : i32
    %c0_i32_0 = arith.constant 0 : i32
    %c0_i32_1 = arith.constant 0 : i32
    return %arg0, %c0_i32, %c0_i32_0 : i32, i32, i32
  }
}

</mosaic_0001>

<llo_original>
// kernel: tpu_custom_call.1
$region0: #{tpu_custom_call.1}
  #allocation0 [shape = 'u32[]', space=smem, size = 0x4, offset = 0x4, fixed_abs, tag = 'smem constant byte address 0x4 - core index']
  #allocation1 [shape = 'u32[144,128]{1,0:T(1,128)}', space=vmem, size = 0x12000, scoped, tag = 'internal scratch']
  %s0 = inlined_call_operand.hbm [shape: f32[16,32], index: 0, kind: input, shape index: {}]
  %s1 = inlined_call_operand.vmem [shape: s32[1,1,16], index: 1, kind: input, shape index: {}]
  %s2 = inlined_call_operand.vmem [shape: f32[1,1,16], index: 2, kind: input, shape index: {}]
  %s3 = inlined_call_operand.hbm [shape: f32[1,1,16], index: 3, kind: output, shape index: {}]
  %s4 = sld [smem:[#allocation0]]
  $region26: #{tpu_custom_call.1} parent=0
    _
  %s6 = ssub.s32 1, %s4
  %s7 = scalar_select 0, %s6, %s4
  $region1: #{tpu_custom_call.1} parent=0
    #allocation2 [shape = 'u8[8192]{0}', space=vmem, size = 0x2000, scoped, tag = 'input window, operand 0, single buffered']
    #allocation3 [shape = 's32[1]{0}', space=sflag, size = 0x4, scoped, tag = 'scoped memory for tpu_custom_call.1']
    #allocation4 [shape = 's32[1]{0}', space=sflag, size = 0x4, scoped, tag = 'scoped memory for tpu_custom_call.1']
    #allocation5 [shape = 'u8[512]{0}', space=vmem, size = 0x400, scoped, tag = 'output window, operand 0, single buffered']
    %8 = vsyncpa [#allocation3], 0
    %9 = vsyncpa [#allocation4], 0
    // Predicated region
    $region2: #{tpu_custom_call.1} parent=1 // pred_check
      _
    $region3: #{tpu_custom_call.1} parent=1 // pred_check_branch
      %11 = sbr.rel (0) target = $region5
    $region4: #{tpu_custom_call.1} parent=1 // pred_region
      %s13 = ssub.s32 256, 256
      %14 = vsyncadd [#allocation3], %s13
      %s15 = sshll.u32 [#allocation2], 4
      %s16 = int_to_ptr.vmem [resolvable:$true] %s15
      %21 = dma.hbm_to_vmem [thread:$0]  %s0, 256, %s16, [#allocation3], 128, 128, 8
    $region5: #{tpu_custom_call.1} parent=1 // pred_fallthru
      _
    // Predicated region
    $region6: #{tpu_custom_call.1} parent=1 // pred_check
      _
    $region7: #{tpu_custom_call.1} parent=1 // pred_check_branch
      %23 = sbr.rel (0) target = $region9
    $region8: #{tpu_custom_call.1} parent=1 // pred_region
      _
    $region9: #{tpu_custom_call.1} parent=1 // pred_fallthru
      _
    // Predicated region
    $region10: #{tpu_custom_call.1} parent=1 // pred_check
      _
    $region11: #{tpu_custom_call.1} parent=1 // pred_check_branch
      %25 = sbr.rel (0) target = $region13
    $region12: #{tpu_custom_call.1} parent=1 // pred_region
      _
    $region13: #{tpu_custom_call.1} parent=1 // pred_fallthru
      _
    // Predicated region
    $region14: #{tpu_custom_call.1} parent=1 // pred_check
      _
    $region15: #{tpu_custom_call.1} parent=1 // pred_check_branch
      %27 = sbr.rel (0) target = $region17
    $region16: #{tpu_custom_call.1} parent=1 // pred_region
      %28 = dma.done [#allocation3], 256
    $region17: #{tpu_custom_call.1} parent=1 // pred_fallthru
      _
    %v29 = vld [vmem:[#allocation2] sm:$0xff]
    %v30 = vld [vmem:[#allocation2 + $0x8] sm:$0xff]
    %vm31 = vcmask 261120
    %v32 = vsel %vm31, %v29, -inf
    %33 = vmax.xlane.f32.xlu0 %v32
    %v34 = vpop.xlane.xlu0 %33
    %v35 = vsel %vm31, %v30, -inf
    %36 = vmax.xlane.f32.xlu0 %v35
    %v37 = vpop.xlane.xlu0 %36
    %v38 = vsub.f32 %v29, %v34
    %v39 = vsub.f32 %v30, %v37
    %v40 = vmul.f32 %v38, 1.442695
    %v41 = vpow.pop %v40
    %v42 = vmul.f32 %v39, 1.442695
    %v43 = vpow.pop %v42
    %v44 = vsel %vm31, %v41, 0.0
    %45 = vadd.xlane.f32.xlu0 %v44
    %v46 = vpop.xlane.xlu0 %45
    %v47 = vsel %vm31, %v43, 0.0
    %48 = vadd.xlane.f32.xlu0 %v47
    %v49 = vpop.xlane.xlu0 %48
    %v50 = vlog2.pop %v46
    %v51 = vmul.f32 %v50, 0.6931472
    %v52 = vlog2.pop %v49
    %v53 = vmul.f32 %v52, 0.6931472
    %v54 = vadd.f32 %v34, %v51
    %v55 = vadd.f32 %v37, %v53
    %v56 = vlaneseq
    %v57 = vshrl.u32 %v56, 7
    %v58 = vadd.s32 %v57, 8
    %v59 = vlaneseq
    %v60 = vand.u32 %v59, 127
    %vm61 = vcmp.eq.s32.totalorder %v57, %v60
    %vm62 = vcmp.eq.s32.totalorder %v58, %v60
    %v63 = vsel %vm61, 1, 0
    %v64 = vsel %vm62, 1, 0
    %v65 = vcvt.s32.f32 %v63
    %v66 = vcvt.s32.f32 %v64
    %v67 = vld [vmem:[%s1] sm:$0x1]
    %v68 = vcvt.s32.f32 %v67
    %v70 = vlaneseq
    %v71 = vshrl.u32 %v70, 7
    %v72 = vsub.s32 0, %v71
    %v73 = vrot.slane %v68, %v72
    %v75 = vmul.f32 %v65, %v73
    %v76 = vmul.f32 %v66, %v73
    %vm77 = vcmask 130048
    %v78 = vsel %vm77, %v75, 0.0
    %79 = vadd.xlane.f32.xlu0 %v78
    %v80 = vpop.xlane.xlu0 %79
    %v81 = vsel %vm77, %v76, 0.0
    %82 = vadd.xlane.f32.xlu0 %v81
    %v83 = vpop.xlane.xlu0 %82
    %v84 = vcvt.f32.s32.to.zero.pseudo %v80
    %v85 = vcvt.f32.s32.to.zero.pseudo %v83
    %vm86 = vcmp.eq.s32.totalorder %v60, %v84
    %vm87 = vcmp.eq.s32.totalorder %v60, %v85
    %v88 = vsel %vm86, %v29, 0.0
    %v89 = vsel %vm87, %v30, 0.0
    %v90 = vsel %vm31, %v88, 0.0
    %91 = vadd.xlane.f32.xlu0 %v90
    %v92 = vpop.xlane.xlu0 %91
    %v93 = vsel %vm31, %v89, 0.0
    %94 = vadd.xlane.f32.xlu0 %v93
    %v95 = vpop.xlane.xlu0 %94
    %v96 = vsub.f32 %v54, %v92
    %v97 = vsub.f32 %v55, %v95
    %v98 = vmul.f32 %v65, %v96
    %v99 = vmul.f32 %v66, %v97
    %v100 = vsel %vm77, %v98, 0.0
    %v101 = vsel %vm77, %v99, 0.0
    %v102 = vadd.f32 %v100, %v101
    %v103 = vrot.slane %v102, 4
    %v104 = vadd.f32 %v102, %v103
    %v105 = vrot.slane %v104, 2
    %v106 = vadd.f32 %v104, %v105
    %v107 = vrot.slane %v106, 1
    %v108 = vadd.f32 %v106, %v107
    %v109 = vld [vmem:[%s2] sm:$0x1]
    %v110 = vmul.f32 %v108, %v109
    %vm111 = vcmask 122880
    %112 = vst.msk [vmem:[#allocation5] sm:$0x1] %vm111, %v110
    // Predicated region
    $region18: #{tpu_custom_call.1} parent=1 // pred_check
      _
    $region19: #{tpu_custom_call.1} parent=1 // pred_check_branch
      %114 = sbr.rel (0) target = $region21
    $region20: #{tpu_custom_call.1} parent=1 // pred_region
      %s116 = ssub.s32 16, 16
      %117 = vsyncadd [#allocation4], %s116
      %s119 = sshll.u32 [#allocation5], 4
      %s120 = int_to_ptr.vmem [resolvable:$true] %s119
      %122 = dma.vmem_to_hbm [thread:$0]  %s120, 16, %s3, [#allocation4]
    $region21: #{tpu_custom_call.1} parent=1 // pred_fallthru
      _
    // Predicated region
    $region22: #{tpu_custom_call.1} parent=1 // pred_check
      _
    $region23: #{tpu_custom_call.1} parent=1 // pred_check_branch
      %124 = sbr.rel (0) target = $region25
    $region24: #{tpu_custom_call.1} parent=1 // pred_region
      %125 = dma.done [#allocation4], 16
    $region25: #{tpu_custom_call.1} parent=1 // pred_fallthru
      _
    %126 = vsyncpa [#allocation3], 1
    %127 = vsyncpa [#allocation4], 1

</llo_original>
